<compile_context>
chip_gen: v6e
topology: v6e:2x2x1
jax: 0.10.0
libtpu: 0.0.40
codegen_flags: <defaults>
</compile_context>

<pallas_src>
import functools

import jax
import jax.numpy as jnp
from jax.experimental import pallas as pl
from jax.experimental.pallas import tpu as pltpu


def _spatial_softmax_kernel(temp_ref, x_ref, o_ref, *, upcast):
    # x_ref: (bn, C, hw_tile) block in VMEM; temp_ref: (1,) f32 scalar in SMEM.
    x = x_ref[...]
    if upcast:
        # Needed on v5e (no bf16 VPU/EUP) and for non-bf16 narrow dtypes.
        x = x.astype(jnp.float32)
    # Numerically-stabilized softmax over the channel axis (axis=1).
    m = jnp.max(x, axis=1, keepdims=True)                       # (bn, 1, hw)
    e = jnp.exp(x - m)                                          # (bn, C, hw)
    s = jnp.sum(e, axis=1, keepdims=True, dtype=jnp.float32)    # f32 accumulate
    # Fold temp into the reciprocal: one mul on the (bn, 1, hw) row instead of
    # a second full (bn, C, hw) multiply.
    inv = (temp_ref[0] * pl.reciprocal(s, approx=False)).astype(e.dtype)
    o_ref[...] = (e * inv).astype(o_ref.dtype)


def _is_v5e_like():
    try:
        kind = jax.devices()[0].device_kind.lower()
    except Exception:
        return False
    return ("v5e" in kind) or ("v5 lite" in kind) or ("v5lite" in kind)


def _needs_f32_upcast(dtype):
    if dtype == jnp.float32:
        return False
    if dtype == jnp.bfloat16 and not _is_v5e_like():
        return False  # bf16 VPU/EUP available on v6e/v7x
    return True


def spatial_softmax2d(x, temp, *, footprint_budget_bytes=None):
    """x: (N, C, H, W); temp: scalar.  Softmax over C at every (h, w), * temp."""
    N, C, H, W = x.shape
    HW = H * W
    itemsize = jnp.dtype(x.dtype).itemsize

    # Flatten spatial dims so H*W sits on the lane axis (lane-dense stores).
    # No padding: ragged last blocks are handled by the cdiv grid below.
    x2 = x.reshape(N, C, HW)

    # ---- dtype / chip gating -------------------------------------------------
    upcast = _needs_f32_upcast(x.dtype)
    compute_itemsize = 4 if (upcast or x.dtype == jnp.float32) else itemsize

    # ---- VMEM budgets (generation aware) ------------------------------------
    try:
        vmem_cap = int(pltpu.get_tpu_info().vmem_capacity_bytes)
    except Exception:
        vmem_cap = 64 << 20  # conservative (v7x-sized) fallback
    if footprint_budget_bytes is None:
        # ~32 MiB modeled footprint on 64 MiB parts (v7x), ~48 MiB on 128 MiB
        # parts (v5e/v6e).  >= ~1-2 MiB lane-dense tiles already sit near the
        # HBM roofline, so the tighter v7x budget costs nothing.
        footprint_budget = max(8 << 20, min(vmem_cap // 2, 48 << 20))
    else:
        footprint_budget = int(footprint_budget_bytes)

    # ---- block sizing: cdiv-based, no divisor constraints --------------------
    HW_pad128 = pl.cdiv(HW, 128) * 128

    def footprint(bn_, hw_):
        blk = bn_ * C * hw_
        io = 4 * blk * itemsize            # double-buffered input + output
        tmp = 2 * blk * compute_itemsize   # in-kernel x / e temporaries
        rows = 4 * bn_ * hw_ * 4           # m / s / inv row temporaries (f32)
        return io + tmp + rows

    unit = footprint(1, 128)
    lane_groups = max(1, min(HW_pad128 // 128, footprint_budget // max(unit, 1)))
    hw_tile = lane_groups * 128
    if hw_tile >= HW:
        # Full-extent lane block: always legal, no lane raggedness at all.
        hw_tile = HW
    bn = max(1, min(N, footprint_budget // max(footprint(1, hw_tile), 1)))

    # v7x has 2 TensorCores and shards "parallel" grid axes across them; make
    # sure there are >= 2 blocks so neither core idles.  Costs one ~0.35us
    # grid step on single-TC v5e/v6e -> negligible.
    if pl.cdiv(N, bn) * pl.cdiv(HW, hw_tile) < 2:
        if bn > 1:
            bn = pl.cdiv(bn, 2)
        elif hw_tile > 128:
            hw_tile = pl.cdiv(hw_tile // 2, 128) * 128

    grid = (pl.cdiv(N, bn), pl.cdiv(HW, hw_tile))

    modeled = footprint(bn, hw_tile)
    assert modeled <= vmem_cap, (
        f"modeled VMEM footprint {modeled} B exceeds capacity {vmem_cap} B "
        f"(channel dim C={C} too large for a single block)")
    vmem_limit = int(min(vmem_cap,
                         max(modeled + (8 << 20), min(vmem_cap * 3 // 4, 96 << 20))))

    temp_arr = jnp.asarray(temp, dtype=jnp.float32).reshape(1)
    kernel = functools.partial(_spatial_softmax_kernel, upcast=upcast)

    out = pl.pallas_call(
        kernel,
        out_shape=jax.ShapeDtypeStruct((N, C, HW), x.dtype),
        grid=grid,
        in_specs=[
            pl.BlockSpec(memory_space=pltpu.SMEM),                    # temp scalar
            pl.BlockSpec((bn, C, hw_tile), lambda i, j: (i, 0, j)),   # x tile
        ],
        out_specs=pl.BlockSpec((bn, C, hw_tile), lambda i, j: (i, 0, j)),
        compiler_params=pltpu.CompilerParams(
            dimension_semantics=("parallel", "parallel"),
            vmem_limit_bytes=vmem_limit,
        ),
    )(temp_arr, x2)

    return out.reshape(N, C, H, W)


def _reference(x, temp):
    # Pure-JAX reference: softmax over the channel dim, scaled by temp.
    m = jnp.max(x, axis=1, keepdims=True)
    e = jnp.exp(x - m)
    return (e / jnp.sum(e, axis=1, keepdims=True)) * temp


if __name__ == "__main__":
    key = jax.random.PRNGKey(0)

    # Primary toy shape from the module spec.
    N, C, H, W = 2, 4, 16, 16
    x = jax.random.normal(key, (N, C, H, W), dtype=jnp.float32)
    for temp in (1.0, 0.5):  # default init is nn.Parameter([1.0])
        y = jax.block_until_ready(spatial_softmax2d(x, temp))
        y_ref = _reference(x, temp)
        assert y.shape == (N, C, H, W)
        assert jnp.allclose(y, y_ref, atol=1e-5, rtol=1e-5), "mismatch vs reference"

    # Ragged shape (H*W=225, N=3) with a tiny forced budget to exercise the
    # cdiv grid / masked partial-block path used for awkward production shapes.
    key2 = jax.random.PRNGKey(1)
    xr = jax.random.normal(key2, (3, 4, 9, 25), dtype=jnp.float32)
    yr = jax.block_until_ready(
        spatial_softmax2d(xr, 0.75, footprint_budget_bytes=16 * 1024))
    yr_ref = _reference(xr, 0.75)
    assert yr.shape == xr.shape
    assert jnp.allclose(yr, yr_ref, atol=1e-5, rtol=1e-5), "ragged mismatch"

    print("KERNEL_OK")
</pallas_src>

<mosaic_0001>
module attributes {stable_mosaic.version = 11 : i64} {
  func.func @_spatial_softmax_kernel(%arg0: i32, %arg1: i32, %arg2: memref<1xf32, #tpu.memory_space<smem>>, %arg3: memref<1x4x256xf32, #tpu.memory_space<vmem>>, %arg4: memref<1x4x256xf32, #tpu.memory_space<vmem>>) attributes {dimension_semantics = [#tpu.dimension_semantics<parallel>, #tpu.dimension_semantics<parallel>], iteration_bounds = array<i64: 2, 1>, scalar_prefetch = 0 : i64, scratch_operands = 0 : i64, tpu.core_type = #tpu.core_type<tc>, window_params = [{transform_indices = @transform_0, window_bounds = array<i64: 1>}, {transform_indices = @transform_1, window_bounds = array<i64: 1, 4, 256>}, {transform_indices = @transform_2, window_bounds = array<i64: 1, 4, 256>}]} {
    %c0 = arith.constant 0 : index
    %c0_0 = arith.constant 0 : index
    %c0_1 = arith.constant 0 : index
    %0 = vector.load %arg3[%c0, %c0_0, %c0_1] : memref<1x4x256xf32, #tpu.memory_space<vmem>>, vector<1x4x256xf32>
    %cst = arith.constant dense<0xFF800000> : vector<1x256xf32>
    %1 = vector.multi_reduction <maximumf>, %0, %cst [1] : vector<1x4x256xf32> to vector<1x256xf32>
    %2 = vector.shape_cast %1 : vector<1x256xf32> to vector<1x1x256xf32>
    %3 = vector.broadcast %2 : vector<1x1x256xf32> to vector<1x4x256xf32>
    %4 = arith.subf %0, %3 : vector<1x4x256xf32>
    %5 = math.exp %4 : vector<1x4x256xf32>
    %cst_2 = arith.constant dense<0.000000e+00> : vector<1x256xf32>
    %6 = vector.multi_reduction <add>, %5, %cst_2 [1] : vector<1x4x256xf32> to vector<1x256xf32>
    %7 = vector.shape_cast %6 : vector<1x256xf32> to vector<1x1x256xf32>
    %c0_3 = arith.constant 0 : index
    %8 = memref.load %arg2[%c0_3] : memref<1xf32, #tpu.memory_space<smem>>
    %9 = tpu.reciprocal %7 : vector<1x1x256xf32> -> vector<1x1x256xf32>
    %10 = vector.broadcast %8 : f32 to vector<1x1x256xf32>
    %11 = arith.mulf %10, %9 : vector<1x1x256xf32>
    %12 = vector.broadcast %11 : vector<1x1x256xf32> to vector<1x4x256xf32>
    %13 = arith.mulf %5, %12 : vector<1x4x256xf32>
    %c0_4 = arith.constant 0 : index
    %c0_5 = arith.constant 0 : index
    %c0_6 = arith.constant 0 : index
    %14 = vector.load %arg4[%c0_4, %c0_5, %c0_6] : memref<1x4x256xf32, #tpu.memory_space<vmem>>, vector<1x4x256xf32>
    tpu.vector_store %arg4[%c0_4, %c0_5, %c0_6], %13 {strides = array<i32>} : memref<1x4x256xf32, #tpu.memory_space<vmem>>, vector<1x4x256xf32>,
    return
  }
  func.func @transform_0(%arg0: i32, %arg1: i32) -> i32 {
    %c0_i32 = arith.constant 0 : i32
    %c0_i32_0 = arith.constant 0 : i32
    return %c0_i32 : i32
  }
  func.func @transform_1(%arg0: i32, %arg1: i32) -> (i32, i32, i32) {
    %c0_i32 = arith.constant 0 : i32
    %c0_i32_0 = arith.constant 0 : i32
    return %arg0, %c0_i32, %arg1 : i32, i32, i32
  }
  func.func @transform_2(%arg0: i32, %arg1: i32) -> (i32, i32, i32) {
    %c0_i32 = arith.constant 0 : i32
    %c0_i32_0 = arith.constant 0 : i32
    return %arg0, %c0_i32, %arg1 : i32, i32, i32
  }
}

</mosaic_0001>

<llo_original>
// kernel: tpu_custom_call.1
$region0: #{tpu_custom_call.1}
  #allocation0 [shape = 'u32[]', space=smem, size = 0x4, offset = 0x4, fixed_abs, tag = 'smem constant byte address 0x4 - core index']
  #allocation1 [shape = 'u32[144,128]{1,0:T(1,128)}', space=vmem, size = 0x12000, scoped, tag = 'internal scratch']
  #allocation2 [shape = 'f32[1]{0:T(128)S(6)}', space=smem, size = 0x200, scoped, tag = 'scoped memory for tpu_custom_call.1']
  %s0 = inlined_call_operand.<no memory space> [shape: f32[1], index: 0, kind: input, shape index: {}]
  %s1 = inlined_call_operand.hbm [shape: f32[2,4,256], index: 1, kind: input, shape index: {}]
  %s2 = inlined_call_operand.hbm [shape: f32[2,4,256], index: 2, kind: output, shape index: {}]
  %s3 = sld [smem:[#allocation0]]
  $region45: #{tpu_custom_call.1} parent=0
    _
  %s5 = ssub.s32 1, %s3
  %s6 = scalar_select 0, %s5, %s3
  %7 = sst [smem:[#allocation2]] %s0
  $region1: #{tpu_custom_call.1} parent=0
    #allocation3 [shape = 'u8[8192]{0}', space=vmem, size = 0x2000, scoped, tag = 'input window, operand 1']
    #allocation4 [shape = 's32[2]{0}', space=sflag, size = 0x8, scoped, tag = 'scoped memory for tpu_custom_call.1']
    #allocation5 [shape = 's32[2]{0}', space=sflag, size = 0x8, scoped, tag = 'scoped memory for tpu_custom_call.1']
    #allocation6 [shape = 'u8[8192]{0}', space=vmem, size = 0x2000, scoped, tag = 'output window, operand 0']
    %8 = vsyncpa [#allocation4], 0
    %s9 = scalar_lea.sflag [#allocation4], 1
    %10 = vsyncpa %s9, 0
    %11 = vsyncpa [#allocation5], 0
    %s12 = scalar_lea.sflag [#allocation5], 1
    %13 = vsyncpa %s12, 0
    loop: start=0, step=1, limit=4
    $region2: #{tpu_custom_call.1} parent=1 // loop_pre_header
      _
    $region3: #{tpu_custom_call.1} parent=1 // loop_header
      %s15 = sphi 0, %s19
      %p16 = scmp.ge.s32.totalorder %s15, 4
      %s22 = sphi 0, %s34
      %s23 = sphi 0, %s30
      %s24 = sphi 0, %s22
      %s25 = sphi 0, %s23
      %s26 = sphi 0, %s24
      %s27 = sphi 0, %s25
      %s35 = sphi 0, %s35
      %s37 = sphi 0, %s35
      %s38 = sphi 0, %s37
      %s52 = sphi 0, %s38
      %s60 = sphi 0, %s62
      %s63 = sphi 0, %s60
      %s64 = sphi 0, %s63
      %s80 = sphi 0, %s64
      %s88 = sphi 0, %s90
      %s91 = sphi 0, %s88
      %s92 = sphi 0, %s91
      %s108 = sphi 0, %s92
    $region4: #{tpu_custom_call.1} parent=1 // loop_header_branch
      %18 = sbr.rel (%p16) target = $region8
    $region5: #{tpu_custom_call.1} parent=1 // loop_body
      %s20 = ssub.s32 %s15, 1
      %s21 = ssub.s32 %s15, 2
      %s28 = sadd.s32 1, %s23
      %p29 = scmp.ge.s32.totalorder %s28, 1
      %s30 = scalar_select %p29, 0, %s28
      %s31 = sadd.s32 1, %s22
      %s32 = scalar_select %p29, %s31, %s22
      %p33 = scmp.ge.s32.totalorder %s32, 2
      %s34 = scalar_select %p33, 0, %s32
      %s36 = sadd.s32 %s35, 1
      %p39 = scmp.eq.s32.totalorder %s15, 1
      %p40 = scmp.ne.s32.totalorder %s35, %s37
      %p41 = scmp.eq.s32.totalorder %s15, 0
      %p42 = por %p40, %p41
      %p43 = scmp.ne.s32.totalorder %s35, %s37
      %p44 = scmp.eq.s32.totalorder %s20, 1
      %p45 = por %p43, %p44
      %p46 = scmp.ne.s32.totalorder %s37, %s38
      %p47 = scmp.eq.s32.totalorder %s20, 0
      %p48 = por %p46, %p47
      %p49 = scmp.ne.s32.totalorder %s37, %s38
      %p50 = scmp.eq.s32.totalorder %s21, 1
      %p51 = por %p49, %p50
      %p53 = scmp.ne.s32.totalorder %s38, %s52
      %p54 = scmp.eq.s32.totalorder %s21, 0
      %p55 = por %p53, %p54
      %s56 = ssub.s32 %s22, %s34
      %s57 = ssub.s32 %s23, %s30
      %s58 = sor.u32 %s56, %s57
      %p59 = scmp.eq.s32.totalorder %s58, 0
      %s61 = sadd.s32 %s60, 1
      %s62 = scalar_select %p59, %s60, %s61
      %p65 = pneg %p59
      %p66 = scmp.eq.s32.totalorder %s15, 1
      %p67 = por %p65, %p66
      %p68 = scmp.ne.s32.totalorder %s60, %s63
      %p69 = scmp.eq.s32.totalorder %s15, 0
      %p70 = por %p68, %p69
      %p71 = scmp.ne.s32.totalorder %s60, %s63
      %p72 = scmp.eq.s32.totalorder %s20, 1
      %p73 = por %p71, %p72
      %p74 = scmp.ne.s32.totalorder %s63, %s64
      %p75 = scmp.eq.s32.totalorder %s20, 0
      %p76 = por %p74, %p75
      %p77 = scmp.ne.s32.totalorder %s63, %s64
      %p78 = scmp.eq.s32.totalorder %s21, 1
      %p79 = por %p77, %p78
      %p81 = scmp.ne.s32.totalorder %s64, %s80
      %p82 = scmp.eq.s32.totalorder %s21, 0
      %p83 = por %p81, %p82
      %s84 = ssub.s32 %s22, %s34
      %s85 = ssub.s32 %s23, %s30
      %s86 = sor.u32 %s84, %s85
      %p87 = scmp.eq.s32.totalorder %s86, 0
      %s89 = sadd.s32 %s88, 1
      %s90 = scalar_select %p87, %s88, %s89
      %p93 = pneg %p87
      %p94 = scmp.eq.s32.totalorder %s15, 1
      %p95 = por %p93, %p94
      %p96 = scmp.ne.s32.totalorder %s88, %s91
      %p97 = scmp.eq.s32.totalorder %s15, 0
      %p98 = por %p96, %p97
      %p99 = scmp.ne.s32.totalorder %s88, %s91
      %p100 = scmp.eq.s32.totalorder %s20, 1
      %p101 = por %p99, %p100
      %p102 = scmp.ne.s32.totalorder %s91, %s92
      %p103 = scmp.eq.s32.totalorder %s20, 0
      %p104 = por %p102, %p103
      %p105 = scmp.ne.s32.totalorder %s91, %s92
      %p106 = scmp.eq.s32.totalorder %s21, 1
      %p107 = por %p105, %p106
      %p109 = scmp.ne.s32.totalorder %s92, %s108
      %p110 = scmp.eq.s32.totalorder %s21, 0
      %p111 = por %p109, %p110
      %p112 = scmp.le.s32.totalorder 1, %s15
      %p113 = scmp.lt.s32.totalorder %s15, 3
      %p114 = pnand %p112, %p113
      %p115 = pneg %p114
      // Predicated region
      $region9: #{tpu_custom_call.1} parent=5 // pred_check
        _
      $region10: #{tpu_custom_call.1} parent=5 // pred_check_branch
        %117 = sbr.rel (%p114) target = $region12
      $region11: #{tpu_custom_call.1} parent=5 // pred_region
        %s118 = ssub.s32 %s15, 1
        // Predicated region
        $region13: #{tpu_custom_call.1} parent=11 // pred_check
          %p119 = pneg %p48
        $region14: #{tpu_custom_call.1} parent=11 // pred_check_branch
          %121 = sbr.rel (%p119) target = $region16
        $region15: #{tpu_custom_call.1} parent=11 // pred_region
          _
        $region16: #{tpu_custom_call.1} parent=11 // pred_fallthru
          _
      $region12: #{tpu_custom_call.1} parent=5 // pred_fallthru
        _
      %p122 = scmp.lt.s32.totalorder %s15, 2
      // Predicated region
      $region17: #{tpu_custom_call.1} parent=5 // pred_check
        %p123 = pneg %p122
      $region18: #{tpu_custom_call.1} parent=5 // pred_check_branch
        %125 = sbr.rel (%p123) target = $region20
      $region19: #{tpu_custom_call.1} parent=5 // pred_region
        // Predicated region
        $region21: #{tpu_custom_call.1} parent=19 // pred_check
          %p126 = pneg %p70
        $region22: #{tpu_custom_call.1} parent=19 // pred_check_branch
          %128 = sbr.rel (%p126) target = $region24
        $region23: #{tpu_custom_call.1} parent=19 // pred_region
          %s129 = sand.u32 %s60, 1
          %s130 = scalar_lea.sflag [#allocation4], %s129
          %s131 = sand.u32 %s60, 1
          %s132 = smul.addr %s131, 8
          %s133 = scalar_lea.vmem [#allocation3], %s132
          %s134 = smul.u32 2, %s23
          %s136 = ssub.s32 128, 128
          %137 = vsyncadd %s130, %s136
          %s138 = smul.addr %s22, 2
          %s139 = sadd.s32 %s134, %s138
          %s140 = smul.addr %s139, 64
          %s141 = scalar_lea.hbm %s1, %s140
          %s143 = sshll.u32 %s133, 4
          %s144 = int_to_ptr.vmem [resolvable:$true] %s143
          %146 = dma.hbm_to_vmem [thread:$0]  %s141, 128, %s144, %s130
        $region24: #{tpu_custom_call.1} parent=19 // pred_fallthru
          _
      $region20: #{tpu_custom_call.1} parent=5 // pred_fallthru
        _
      %p147 = scmp.le.s32.totalorder 1, %s15
      %p148 = scmp.lt.s32.totalorder %s15, 3
      %p149 = pnand %p147, %p148
      %p150 = pneg %p149
      // Predicated region
      $region25: #{tpu_custom_call.1} parent=5 // pred_check
        _
      $region26: #{tpu_custom_call.1} parent=5 // pred_check_branch
        %152 = sbr.rel (%p149) target = $region28
      $region27: #{tpu_custom_call.1} parent=5 // pred_region
        %s153 = ssub.s32 %s15, 1
        %s154 = sand.u32 %s63, 1
        %s155 = scalar_lea.sflag [#allocation4], %s154
        %s156 = sand.u32 %s63, 1
        %s157 = smul.addr %s156, 8
        %s158 = scalar_lea.vmem [#allocation3], %s157
        // Predicated region
        $region29: #{tpu_custom_call.1} parent=27 // pred_check
          %p159 = pneg %p76
        $region30: #{tpu_custom_call.1} parent=27 // pred_check_branch
          %161 = sbr.rel (%p159) target = $region32
        $region31: #{tpu_custom_call.1} parent=27 // pred_region
          %162 = dma.done %s155, 128
        $region32: #{tpu_custom_call.1} parent=27 // pred_fallthru
          _
        %p163 = pneg %p48
        %p164 = pneg %p45
        %s165 = sand.u32 %s63, 1
        %s166 = scalar_lea.sflag [#allocation4], %s165
        %s167 = sand.u32 %s63, 1
        %s168 = smul.addr %s167, 8
        %s169 = scalar_lea.vmem [#allocation3], %s168
        %p170 = pneg %p76
        %p171 = pneg %p73
        %p172 = pneg %p104
        %p173 = pneg %p101
        %s174 = sand.u32 %s91, 1
        %s175 = scalar_lea.sflag [#allocation5], %s174
        %s176 = sand.u32 %s91, 1
        %s177 = smul.addr %s176, 8
        %s178 = scalar_lea.vmem [#allocation6], %s177
        %s179 = smul.u32 2, %s25
        %s180 = smul.u32 2, %s25
        %v181 = vld [vmem:[%s158] sm:$0xff]
        %v183 = vcombine.high %v181, %v181
        %vm185 = vcmask 1043456
        %v186 = vsel %vm185, %v181, -inf
        %v187 = vrot.slane %v186, 4
        %v188 = vmax.f32 %v186, %v187
        %v189 = vrot.slane %v188, 2
        %v190 = vmax.f32 %v188, %v189
        %v191 = vrot.slane %v190, 1
        %v192 = vmax.f32 %v190, %v191
        %v193 = vsel %vm185, %v183, -inf
        %v194 = vrot.slane %v193, 4
        %v195 = vmax.f32 %v193, %v194
        %v196 = vrot.slane %v195, 2
        %v197 = vmax.f32 %v195, %v196
        %v198 = vrot.slane %v197, 1
        %v199 = vmax.f32 %v197, %v198
        %v202 = vcombine.low %v192, %v199
        %v204 = vsub.f32 %v181, %v202
        %v205 = vmul.f32 %v204, 1.442695
        %v206 = vpow.pop %v205
        %v208 = vcombine.high %v206, %v206
        %v210 = vsel %vm185, %v206, 0.0
        %v211 = vrot.slane %v210, 4
        %v212 = vadd.f32 %v210, %v211
        %v213 = vrot.slane %v212, 2
        %v214 = vadd.f32 %v212, %v213
        %v215 = vrot.slane %v214, 1
        %v216 = vadd.f32 %v214, %v215
        %v217 = vsel %vm185, %v208, 0.0
        %v218 = vrot.slane %v217, 4
        %v219 = vadd.f32 %v217, %v218
        %v220 = vrot.slane %v219, 2
        %v221 = vadd.f32 %v219, %v220
        %v222 = vrot.slane %v221, 1
        %v223 = vadd.f32 %v221, %v222
        %s224 = sld [smem:[#allocation2]]
        %v225 = vrcp.pop %v216
        %v226 = vrcp.pop %v223
        %v227 = vstv %s224
        %v228 = vmul.f32 %v227, %v225
        %v229 = vmul.f32 %v227, %v226
        %v232 = vcombine.low %v228, %v229
        %v234 = vmul.f32 %v206, %v232
        %235 = vst [vmem:[%s178] sm:$0xff] %v234
        %s236 = sand.u32 %s91, 1
        %s237 = scalar_lea.sflag [#allocation5], %s236
        %s238 = sand.u32 %s91, 1
        %s239 = smul.addr %s238, 8
        %s240 = scalar_lea.vmem [#allocation6], %s239
        // Predicated region
        $region33: #{tpu_custom_call.1} parent=27 // pred_check
          %p241 = pneg %p101
        $region34: #{tpu_custom_call.1} parent=27 // pred_check_branch
          %243 = sbr.rel (%p241) target = $region36
        $region35: #{tpu_custom_call.1} parent=27 // pred_region
          %s244 = smul.u32 2, %s25
          %s246 = ssub.s32 128, 128
          %247 = vsyncadd %s237, %s246
          %s248 = smul.addr %s24, 2
          %s249 = sadd.s32 %s244, %s248
          %s250 = smul.addr %s249, 64
          %s251 = scalar_lea.hbm %s2, %s250
          %s253 = sshll.u32 %s240, 4
          %s254 = int_to_ptr.vmem [resolvable:$true] %s253
          %256 = dma.vmem_to_hbm [thread:$0]  %s254, 128, %s251, %s237
        $region36: #{tpu_custom_call.1} parent=27 // pred_fallthru
          _
      $region28: #{tpu_custom_call.1} parent=5 // pred_fallthru
        _
      %p257 = scmp.le.s32.totalorder 2, %s15
      // Predicated region
      $region37: #{tpu_custom_call.1} parent=5 // pred_check
        %p258 = pneg %p257
      $region38: #{tpu_custom_call.1} parent=5 // pred_check_branch
        %260 = sbr.rel (%p258) target = $region40
      $region39: #{tpu_custom_call.1} parent=5 // pred_region
        %s261 = ssub.s32 %s15, 2
        // Predicated region
        $region41: #{tpu_custom_call.1} parent=39 // pred_check
          %p262 = pneg %p107
        $region42: #{tpu_custom_call.1} parent=39 // pred_check_branch
          %264 = sbr.rel (%p262) target = $region44
        $region43: #{tpu_custom_call.1} parent=39 // pred_region
          %s265 = sand.u32 %s92, 1
          %s266 = scalar_lea.sflag [#allocation5], %s265
          %s267 = sand.u32 %s92, 1
          %s268 = smul.addr %s267, 8
          %s269 = scalar_lea.vmem [#allocation6], %s268
          %270 = dma.done %s266, 128
        $region44: #{tpu_custom_call.1} parent=39 // pred_fallthru
          _
      $region40: #{tpu_custom_call.1} parent=5 // pred_fallthru
        _
    $region6: #{tpu_custom_call.1} parent=1 // loop_footer
      %s19 = sadd.s32 1, %s15
    $region7: #{tpu_custom_call.1} parent=1 // loop_footer_branch
      %14 = sbr.rel target = $region3
    $region8: #{tpu_custom_call.1} parent=1 // loop_exit
      _
    %271 = vsyncpa [#allocation4], 1
    %s272 = scalar_lea.sflag [#allocation4], 1
    %273 = vsyncpa %s272, 1
    %274 = vsyncpa [#allocation5], 1
    %s275 = scalar_lea.sflag [#allocation5], 1
    %276 = vsyncpa %s275, 1

</llo_original>
